<compile_context>
chip_gen: v7x
topology: tpu7x:2x2x1
jax: 0.10.0
libtpu: 0.0.40
codegen_flags: <defaults>
</compile_context>

<pallas_src>
import functools

import jax
import jax.numpy as jnp
from jax import lax
from jax.experimental import pallas as pl
from jax.experimental.pallas import tpu as pltpu


def _critic_kernel(s_ref, a_ref, w1s_ref, w1a_ref, b1_ref,
                   w2_ref, b2_ref, w3_ref, b3_ref, wqt_ref, bq_ref, o_ref):
    """One batch tile of the critic MLP.

    Shapes (P rows packed per lane group, F = P*H lanes, tbp packed rows / tile):
      s_ref:(tbp,P*S)  a_ref:(tbp,P*A)  w1s:(P*S,F)  w1a:(P*A,F)  b1:(1,F)
      w2,w3:(F,F)  b2,b3:(1,F)  wqt:(P,F)  bq:(1,1)  o_ref:(P,tbp)
    """
    cd = w2_ref.dtype  # matmul operand dtype (f32 or bf16); accumulation is always f32

    # Fused concat: [state|action] @ W1 == state @ W1_s + action @ W1_a.
    h1 = jnp.tanh(
        jnp.dot(s_ref[...], w1s_ref[...], preferred_element_type=jnp.float32)
        + jnp.dot(a_ref[...], w1a_ref[...], preferred_element_type=jnp.float32)
        + b1_ref[...])
    h2 = jnp.tanh(
        jnp.dot(h1.astype(cd), w2_ref[...], preferred_element_type=jnp.float32)
        + b2_ref[...])
    h3 = jnp.tanh(
        jnp.dot(h2.astype(cd), w3_ref[...], preferred_element_type=jnp.float32)
        + b3_ref[...])

    # Lane-dense q head: contract the F lanes of h3 against the P rows of wqt,
    # giving a (P, tbp) slab -- q[p, i] is the q value of original row i*P + p.
    q = lax.dot_general(
        wqt_ref[...], h3,
        dimension_numbers=(((1,), (1,)), ((), ())),
        preferred_element_type=jnp.float32) + bq_ref[...]
    o_ref[...] = q.astype(o_ref.dtype)


def _block_diag(w, p):
    """kron(I_p, w): p copies of w on the block diagonal."""
    if p == 1:
        return w
    return jnp.kron(jnp.eye(p, dtype=w.dtype), w)


@functools.partial(jax.jit, static_argnames=("batch_tile", "compute_dtype"))
def critic_forward(state, action, params, *, batch_tile=2048,
                   compute_dtype=jnp.float32):
    """Forward pass of the Critic. Returns q values with shape [batch]."""
    w1s, w1a, b1, w2, b2, w3, b3, wq, bq = params
    B = state.shape[0]
    S = w1s.shape[0]
    A = w1a.shape[0]
    H = w1s.shape[1]

    cd = jnp.dtype(compute_dtype)

    # ---- Lane packing factor: fold P batch rows into the 128 lanes -----------
    P = 128 // H if (H < 128 and 128 % H == 0) else 1
    F = P * H

    # Block-diagonal weights (<= 128x128, tiny) and lane-tiled biases.
    w1s_b = _block_diag(w1s, P).astype(cd)            # (P*S, F)
    w1a_b = _block_diag(w1a, P).astype(cd)            # (P*A, F)
    w2_b = _block_diag(w2, P).astype(cd)              # (F, F)
    w3_b = _block_diag(w3, P).astype(cd)              # (F, F)
    b1_t = jnp.tile(b1.astype(jnp.float32), (1, P))   # (1, F)
    b2_t = jnp.tile(b2.astype(jnp.float32), (1, P))
    b3_t = jnp.tile(b3.astype(jnp.float32), (1, P))
    wq_t = _block_diag(wq.astype(jnp.float32), P)     # (P, F)  q head stays f32
    bq_s = bq.astype(jnp.float32).reshape(1, 1)

    # ---- Pack P rows per packed row (pads at most P-1 tail rows) --------------
    state = state.astype(cd)
    action = action.astype(cd)
    Bp = pl.cdiv(B, P) * P
    if Bp != B:
        pad = Bp - B
        state = jnp.pad(state, ((0, pad), (0, 0)))
        action = jnp.pad(action, ((0, pad), (0, 0)))
    BP = Bp // P
    state_p = state.reshape(BP, P * S)     # free row-major view
    action_p = action.reshape(BP, P * A)

    # ---- Batch-tile selection (in packed rows) --------------------------------
    # Tiles are multiples of 128 packed rows so every BlockSpec obeys the (8,128)
    # rule; the ragged last block is handled by Pallas' edge masking (no big pad).
    tbp_cap = max(128, (batch_tile // P) // 128 * 128)
    if BP <= 256:
        tbp = BP                           # small batch: single grid step
    else:
        # >= 2 grid steps so "parallel" can shard across v7x's 2 TensorCores.
        tbp = min(tbp_cap, pl.cdiv(pl.cdiv(BP, 2), 128) * 128)
    grid = (pl.cdiv(BP, tbp),)

    cost = pl.CostEstimate(
        flops=2 * B * H * (S + A + 2 * H + 1),
        transcendentals=3 * B * H,
        bytes_accessed=(B * (S + A) * cd.itemsize + B * 4
                        + F * (P * S + P * A + 2 * F) * cd.itemsize))

    # Weights/biases are replicated to every batch tile (index_map -> block (0, 0)).
    rep = lambda r, c: pl.BlockSpec((r, c), lambda i: (0, 0))

    out = pl.pallas_call(
        _critic_kernel,
        out_shape=jax.ShapeDtypeStruct((P, BP), jnp.float32),
        grid=grid,
        in_specs=[
            pl.BlockSpec((tbp, P * S), lambda i: (i, 0)),   # packed state tile
            pl.BlockSpec((tbp, P * A), lambda i: (i, 0)),   # packed action tile
            rep(P * S, F), rep(P * A, F), rep(1, F),        # l1 (split weight) + bias
            rep(F, F), rep(1, F),                           # l2
            rep(F, F), rep(1, F),                           # l3
            rep(P, F), rep(1, 1),                           # q head rows + bias
        ],
        out_specs=pl.BlockSpec((P, tbp), lambda i: (0, i)),
        compiler_params=pltpu.CompilerParams(
            dimension_semantics=("parallel",)),
        cost_estimate=cost,
    )(state_p, action_p, w1s_b, w1a_b, b1_t, w2_b, b2_t, w3_b, b3_t, wq_t, bq_s)

    # out[p, i] = q(row i*P + p)  ->  flatten to (Bp,)  ->  drop the tiny tail pad.
    return out.T.reshape(-1)[:B]


def xavier_normal(key, fan_in, fan_out, shape, dtype=jnp.float32):
    """nn.init.xavier_normal_ std for a Linear(fan_in -> fan_out)."""
    std = jnp.sqrt(2.0 / (fan_in + fan_out))
    return jax.random.normal(key, shape, dtype=dtype) * std


def init_critic_params(key, state_dims, action_dims, hidden_dims):
    in_dim = state_dims + action_dims
    k1, k2, k3, k4 = jax.random.split(key, 4)
    # Full l1 weight drawn jointly (matches xavier over the concat layer), then split.
    w1 = xavier_normal(k1, in_dim, hidden_dims, (in_dim, hidden_dims))
    w1s, w1a = w1[:state_dims], w1[state_dims:]
    b1 = jnp.zeros((1, hidden_dims), jnp.float32)
    w2 = xavier_normal(k2, hidden_dims, hidden_dims, (hidden_dims, hidden_dims))
    b2 = jnp.zeros((1, hidden_dims), jnp.float32)
    w3 = xavier_normal(k3, hidden_dims, hidden_dims, (hidden_dims, hidden_dims))
    b3 = jnp.zeros((1, hidden_dims), jnp.float32)
    wq = xavier_normal(k4, hidden_dims, 1, (1, hidden_dims))   # stored as a row vector
    bq = jnp.zeros((1, 1), jnp.float32)
    return (w1s, w1a, b1, w2, b2, w3, b3, wq, bq)


def critic_reference(state, action, params):
    """Pure-JAX reference (mirrors the PyTorch forward)."""
    w1s, w1a, b1, w2, b2, w3, b3, wq, bq = params
    x = jnp.concatenate([state, action], axis=-1)
    w1 = jnp.concatenate([w1s, w1a], axis=0)
    h1 = jnp.tanh(x @ w1 + b1)
    h2 = jnp.tanh(h1 @ w2 + b2)
    h3 = jnp.tanh(h2 @ w3 + b3)
    q = h3 @ wq.T + bq
    return jnp.squeeze(q, axis=-1)


# TODO(synk): checkpoint save/load and the .to(device) plumbing of the PyTorch module
# are host-side file/device management with no Pallas equivalent; only forward() is
# implemented here.

if __name__ == "__main__":
    state_dims, action_dims, hidden_dims = 12, 4, 32
    batch = 16

    key = jax.random.PRNGKey(0)
    kp, ks, ka = jax.random.split(key, 3)
    params = init_critic_params(kp, state_dims, action_dims, hidden_dims)
    state = jax.random.normal(ks, (batch, state_dims), jnp.float32)
    action = jax.random.normal(ka, (batch, action_dims), jnp.float32)

    q_ref = critic_reference(state, action, params)

    # f32 path: whole (small) batch in a single grid step.
    q = jax.block_until_ready(critic_forward(state, action, params))
    assert q.shape == (batch,), q.shape
    assert jnp.allclose(q, q_ref, atol=1e-4, rtol=1e-4), (q, q_ref)

    # bf16 matmul-operand path (valid on v5e/v6e/v7x: only MXU operands are bf16;
    # all VPU/EUP work stays f32).  Looser tolerance for bf16 operand rounding.
    q_bf16 = jax.block_until_ready(
        critic_forward(state, action, params, compute_dtype=jnp.bfloat16))
    assert jnp.allclose(q_bf16, q_ref, atol=1e-1, rtol=1e-1), (q_bf16, q_ref)

    # Larger batch that is neither a multiple of the packing factor nor of the tile:
    # exercises the <=3-row tail pad, the multi-step grid and the ragged last block.
    big_B = 4099
    ks2, ka2 = jax.random.split(ks, 2)
    state_big = jax.random.normal(ks2, (big_B, state_dims), jnp.float32)
    action_big = jax.random.normal(ka2, (big_B, action_dims), jnp.float32)
    q_big = jax.block_until_ready(critic_forward(state_big, action_big, params))
    q_big_ref = critic_reference(state_big, action_big, params)
    assert q_big.shape == (big_B,), q_big.shape
    assert jnp.allclose(q_big, q_big_ref, atol=1e-4, rtol=1e-4)

    print("KERNEL_OK")
</pallas_src>

<mosaic_0001>
module attributes {stable_mosaic.version = 11 : i64} {
  func.func @_critic_kernel(%arg0: i32, %arg1: memref<4x48xf32, #tpu.memory_space<vmem>>, %arg2: memref<4x16xf32, #tpu.memory_space<vmem>>, %arg3: memref<48x128xf32, #tpu.memory_space<vmem>>, %arg4: memref<16x128xf32, #tpu.memory_space<vmem>>, %arg5: memref<1x128xf32, #tpu.memory_space<vmem>>, %arg6: memref<128x128xf32, #tpu.memory_space<vmem>>, %arg7: memref<1x128xf32, #tpu.memory_space<vmem>>, %arg8: memref<128x128xf32, #tpu.memory_space<vmem>>, %arg9: memref<1x128xf32, #tpu.memory_space<vmem>>, %arg10: memref<4x128xf32, #tpu.memory_space<vmem>>, %arg11: memref<1x1xf32, #tpu.memory_space<vmem>>, %arg12: memref<4x4xf32, #tpu.memory_space<vmem>>) attributes {dimension_semantics = [#tpu.dimension_semantics<parallel>], iteration_bounds = array<i64: 1>, scalar_prefetch = 0 : i64, scratch_operands = 0 : i64, tpu.core_type = #tpu.core_type<tc>, window_params = [{transform_indices = @transform_0, window_bounds = array<i64: 4, 48>}, {transform_indices = @transform_1, window_bounds = array<i64: 4, 16>}, {pipeline_mode = #tpu.pipeline_mode<synchronous>, transform_indices = @transform_2, window_bounds = array<i64: 48, 128>}, {pipeline_mode = #tpu.pipeline_mode<synchronous>, transform_indices = @transform_3, window_bounds = array<i64: 16, 128>}, {pipeline_mode = #tpu.pipeline_mode<synchronous>, transform_indices = @transform_4, window_bounds = array<i64: 1, 128>}, {pipeline_mode = #tpu.pipeline_mode<synchronous>, transform_indices = @transform_5, window_bounds = array<i64: 128, 128>}, {pipeline_mode = #tpu.pipeline_mode<synchronous>, transform_indices = @transform_6, window_bounds = array<i64: 1, 128>}, {pipeline_mode = #tpu.pipeline_mode<synchronous>, transform_indices = @transform_7, window_bounds = array<i64: 128, 128>}, {pipeline_mode = #tpu.pipeline_mode<synchronous>, transform_indices = @transform_8, window_bounds = array<i64: 1, 128>}, {pipeline_mode = #tpu.pipeline_mode<synchronous>, transform_indices = @transform_9, window_bounds = array<i64: 4, 128>}, {pipeline_mode = #tpu.pipeline_mode<synchronous>, transform_indices = @transform_10, window_bounds = array<i64: 1, 1>}, {transform_indices = @transform_11, window_bounds = array<i64: 4, 4>}]} {
    %c0 = arith.constant 0 : index
    %c0_0 = arith.constant 0 : index
    %0 = vector.load %arg1[%c0, %c0_0] : memref<4x48xf32, #tpu.memory_space<vmem>>, vector<4x48xf32>
    %c0_1 = arith.constant 0 : index
    %c0_2 = arith.constant 0 : index
    %1 = vector.load %arg3[%c0_1, %c0_2] : memref<48x128xf32, #tpu.memory_space<vmem>>, vector<48x128xf32>
    %cst = arith.constant dense<0.000000e+00> : vector<4x128xf32>
    %2 = tpu.matmul %0, %1, %cst {dimension_numbers = #tpu.dot_dimension_numbers<[1], [0], [0], [1], [0, 0, 1, 1], [], []>} : vector<4x48xf32>, vector<48x128xf32>, vector<4x128xf32> -> vector<4x128xf32>
    %c0_3 = arith.constant 0 : index
    %c0_4 = arith.constant 0 : index
    %3 = vector.load %arg2[%c0_3, %c0_4] : memref<4x16xf32, #tpu.memory_space<vmem>>, vector<4x16xf32>
    %c0_5 = arith.constant 0 : index
    %c0_6 = arith.constant 0 : index
    %4 = vector.load %arg4[%c0_5, %c0_6] : memref<16x128xf32, #tpu.memory_space<vmem>>, vector<16x128xf32>
    %cst_7 = arith.constant dense<0.000000e+00> : vector<4x128xf32>
    %5 = tpu.matmul %3, %4, %cst_7 {dimension_numbers = #tpu.dot_dimension_numbers<[1], [0], [0], [1], [0, 0, 1, 1], [], []>} : vector<4x16xf32>, vector<16x128xf32>, vector<4x128xf32> -> vector<4x128xf32>
    %6 = arith.addf %2, %5 : vector<4x128xf32>
    %c0_8 = arith.constant 0 : index
    %c0_9 = arith.constant 0 : index
    %7 = vector.load %arg5[%c0_8, %c0_9] : memref<1x128xf32, #tpu.memory_space<vmem>>, vector<1x128xf32>
    %8 = vector.broadcast %7 : vector<1x128xf32> to vector<4x128xf32>
    %9 = arith.addf %6, %8 : vector<4x128xf32>
    %10 = math.tanh %9 : vector<4x128xf32>
    %c0_10 = arith.constant 0 : index
    %c0_11 = arith.constant 0 : index
    %11 = vector.load %arg6[%c0_10, %c0_11] : memref<128x128xf32, #tpu.memory_space<vmem>>, vector<128x128xf32>
    %cst_12 = arith.constant dense<0.000000e+00> : vector<4x128xf32>
    %12 = tpu.matmul %10, %11, %cst_12 {dimension_numbers = #tpu.dot_dimension_numbers<[1], [0], [0], [1], [0, 0, 1, 1], [], []>} : vector<4x128xf32>, vector<128x128xf32>, vector<4x128xf32> -> vector<4x128xf32>
    %c0_13 = arith.constant 0 : index
    %c0_14 = arith.constant 0 : index
    %13 = vector.load %arg7[%c0_13, %c0_14] : memref<1x128xf32, #tpu.memory_space<vmem>>, vector<1x128xf32>
    %14 = vector.broadcast %13 : vector<1x128xf32> to vector<4x128xf32>
    %15 = arith.addf %12, %14 : vector<4x128xf32>
    %16 = math.tanh %15 : vector<4x128xf32>
    %c0_15 = arith.constant 0 : index
    %c0_16 = arith.constant 0 : index
    %17 = vector.load %arg8[%c0_15, %c0_16] : memref<128x128xf32, #tpu.memory_space<vmem>>, vector<128x128xf32>
    %cst_17 = arith.constant dense<0.000000e+00> : vector<4x128xf32>
    %18 = tpu.matmul %16, %17, %cst_17 {dimension_numbers = #tpu.dot_dimension_numbers<[1], [0], [0], [1], [0, 0, 1, 1], [], []>} : vector<4x128xf32>, vector<128x128xf32>, vector<4x128xf32> -> vector<4x128xf32>
    %c0_18 = arith.constant 0 : index
    %c0_19 = arith.constant 0 : index
    %19 = vector.load %arg9[%c0_18, %c0_19] : memref<1x128xf32, #tpu.memory_space<vmem>>, vector<1x128xf32>
    %20 = vector.broadcast %19 : vector<1x128xf32> to vector<4x128xf32>
    %21 = arith.addf %18, %20 : vector<4x128xf32>
    %22 = math.tanh %21 : vector<4x128xf32>
    %c0_20 = arith.constant 0 : index
    %c0_21 = arith.constant 0 : index
    %23 = vector.load %arg10[%c0_20, %c0_21] : memref<4x128xf32, #tpu.memory_space<vmem>>, vector<4x128xf32>
    %cst_22 = arith.constant dense<0.000000e+00> : vector<4x4xf32>
    %24 = tpu.matmul %23, %22, %cst_22 {dimension_numbers = #tpu.dot_dimension_numbers<[1], [1], [0], [0], [0, 0, 1, 0], [], []>} : vector<4x128xf32>, vector<4x128xf32>, vector<4x4xf32> -> vector<4x4xf32>
    %c0_23 = arith.constant 0 : index
    %c0_24 = arith.constant 0 : index
    %25 = vector.load %arg11[%c0_23, %c0_24] : memref<1x1xf32, #tpu.memory_space<vmem>>, vector<1x1xf32>
    %26 = vector.broadcast %25 : vector<1x1xf32> to vector<4x4xf32>
    %27 = arith.addf %24, %26 : vector<4x4xf32>
    %c0_25 = arith.constant 0 : index
    %c0_26 = arith.constant 0 : index
    %28 = vector.load %arg12[%c0_25, %c0_26] : memref<4x4xf32, #tpu.memory_space<vmem>>, vector<4x4xf32>
    tpu.vector_store %arg12[%c0_25, %c0_26], %27 {strides = array<i32>} : memref<4x4xf32, #tpu.memory_space<vmem>>, vector<4x4xf32>,
    return
  }
  func.func @transform_0(%arg0: i32) -> (i32, i32) {
    %c0_i32 = arith.constant 0 : i32
    %c0_i32_0 = arith.constant 0 : i32
    return %arg0, %c0_i32 : i32, i32
  }
  func.func @transform_1(%arg0: i32) -> (i32, i32) {
    %c0_i32 = arith.constant 0 : i32
    %c0_i32_0 = arith.constant 0 : i32
    return %arg0, %c0_i32 : i32, i32
  }
  func.func @transform_2(%arg0: i32) -> (i32, i32) {
    %c0_i32 = arith.constant 0 : i32
    %c0_i32_0 = arith.constant 0 : i32
    %c0_i32_1 = arith.constant 0 : i32
    return %c0_i32, %c0_i32_0 : i32, i32
  }
  func.func @transform_3(%arg0: i32) -> (i32, i32) {
    %c0_i32 = arith.constant 0 : i32
    %c0_i32_0 = arith.constant 0 : i32
    %c0_i32_1 = arith.constant 0 : i32
    return %c0_i32, %c0_i32_0 : i32, i32
  }
  func.func @transform_4(%arg0: i32) -> (i32, i32) {
    %c0_i32 = arith.constant 0 : i32
    %c0_i32_0 = arith.constant 0 : i32
    %c0_i32_1 = arith.constant 0 : i32
    return %c0_i32, %c0_i32_0 : i32, i32
  }
  func.func @transform_5(%arg0: i32) -> (i32, i32) {
    %c0_i32 = arith.constant 0 : i32
    %c0_i32_0 = arith.constant 0 : i32
    %c0_i32_1 = arith.constant 0 : i32
    return %c0_i32, %c0_i32_0 : i32, i32
  }
  func.func @transform_6(%arg0: i32) -> (i32, i32) {
    %c0_i32 = arith.constant 0 : i32
    %c0_i32_0 = arith.constant 0 : i32
    %c0_i32_1 = arith.constant 0 : i32
    return %c0_i32, %c0_i32_0 : i32, i32
  }
  func.func @transform_7(%arg0: i32) -> (i32, i32) {
    %c0_i32 = arith.constant 0 : i32
    %c0_i32_0 = arith.constant 0 : i32
    %c0_i32_1 = arith.constant 0 : i32
    return %c0_i32, %c0_i32_0 : i32, i32
  }
  func.func @transform_8(%arg0: i32) -> (i32, i32) {
    %c0_i32 = arith.constant 0 : i32
    %c0_i32_0 = arith.constant 0 : i32
    %c0_i32_1 = arith.constant 0 : i32
    return %c0_i32, %c0_i32_0 : i32, i32
  }
  func.func @transform_9(%arg0: i32) -> (i32, i32) {
    %c0_i32 = arith.constant 0 : i32
    %c0_i32_0 = arith.constant 0 : i32
    %c0_i32_1 = arith.constant 0 : i32
    return %c0_i32, %c0_i32_0 : i32, i32
  }
  func.func @transform_10(%arg0: i32) -> (i32, i32) {
    %c0_i32 = arith.constant 0 : i32
    %c0_i32_0 = arith.constant 0 : i32
    %c0_i32_1 = arith.constant 0 : i32
    return %c0_i32, %c0_i32_0 : i32, i32
  }
  func.func @transform_11(%arg0: i32) -> (i32, i32) {
    %c0_i32 = arith.constant 0 : i32
    %c0_i32_0 = arith.constant 0 : i32
    return %c0_i32, %arg0 : i32, i32
  }
}

</mosaic_0001>

<llo_original>
// kernel: critic_forward.1
$region0: #{critic_forward.1}
  #allocation0 [shape = 'u32[]', space=smem, size = 0x4, offset = 0x4, fixed_abs, tag = 'smem constant byte address 0x4 - core index']
  #allocation1 [shape = 'u32[144,128]{1,0:T(1,128)}', space=vmem, size = 0x12000, scoped, tag = 'internal scratch']
  #allocation2 [shape = 'f32[1,1]{1,0:T(1,128)S(1)}', space=vmem, size = 0x200, scoped, tag = 'scoped memory for critic_forward.1']
  %s0 = inlined_call_operand.vmem [shape: f32[4,48], index: 0, kind: input, shape index: {}]
  %s1 = inlined_call_operand.vmem [shape: f32[4,16], index: 1, kind: input, shape index: {}]
  %s2 = inlined_call_operand.vmem [shape: f32[48,128], index: 2, kind: input, shape index: {}]
  %s3 = inlined_call_operand.vmem [shape: f32[16,128], index: 3, kind: input, shape index: {}]
  %s4 = inlined_call_operand.vmem [shape: f32[1,128], index: 4, kind: input, shape index: {}]
  %s5 = inlined_call_operand.vmem [shape: f32[128,128], index: 5, kind: input, shape index: {}]
  %s6 = inlined_call_operand.vmem [shape: f32[1,128], index: 6, kind: input, shape index: {}]
  %s7 = inlined_call_operand.vmem [shape: f32[128,128], index: 7, kind: input, shape index: {}]
  %s8 = inlined_call_operand.vmem [shape: f32[1,128], index: 8, kind: input, shape index: {}]
  %s9 = inlined_call_operand.vmem [shape: f32[4,128], index: 9, kind: input, shape index: {}]
  %s10 = inlined_call_operand.<no memory space> [shape: f32[1,1], index: 10, kind: input, shape index: {}]
  %s11 = inlined_call_operand.vmem [shape: f32[4,4], index: 11, kind: output, shape index: {}]
  %s12 = sld [smem:[#allocation0]]
  $region54: #{critic_forward.1} parent=0
    _
  %s14 = ssub.s32 1, %s12
  %s15 = scalar_select 0, %s14, %s12
  %v16 = vstv %s10
  %17 = vst [vmem:[#allocation2] sm:$0x1] %v16
  // Predicated region
  $region2: #{critic_forward.1} parent=0 // pred_check
    _
  $region3: #{critic_forward.1} parent=0 // pred_check_branch
    %19 = sbr.rel (0) target = $region5
  $region4: #{critic_forward.1} parent=0 // pred_region
    _
  $region5: #{critic_forward.1} parent=0 // pred_fallthru
    _
  // Predicated region
  $region6: #{critic_forward.1} parent=0 // pred_check
    _
  $region7: #{critic_forward.1} parent=0 // pred_check_branch
    %21 = sbr.rel (0) target = $region9
  $region8: #{critic_forward.1} parent=0 // pred_region
    _
  $region9: #{critic_forward.1} parent=0 // pred_fallthru
    _
  // Predicated region
  $region10: #{critic_forward.1} parent=0 // pred_check
    _
  $region11: #{critic_forward.1} parent=0 // pred_check_branch
    %23 = sbr.rel (0) target = $region13
  $region12: #{critic_forward.1} parent=0 // pred_region
    _
  $region13: #{critic_forward.1} parent=0 // pred_fallthru
    _
  // Predicated region
  $region14: #{critic_forward.1} parent=0 // pred_check
    _
  $region15: #{critic_forward.1} parent=0 // pred_check_branch
    %25 = sbr.rel (0) target = $region17
  $region16: #{critic_forward.1} parent=0 // pred_region
    _
  $region17: #{critic_forward.1} parent=0 // pred_fallthru
    _
  // Predicated region
  $region18: #{critic_forward.1} parent=0 // pred_check
    _
  $region19: #{critic_forward.1} parent=0 // pred_check_branch
    %27 = sbr.rel (0) target = $region21
  $region20: #{critic_forward.1} parent=0 // pred_region
    _
  $region21: #{critic_forward.1} parent=0 // pred_fallthru
    _
  // Predicated region
  $region22: #{critic_forward.1} parent=0 // pred_check
    _
  $region23: #{critic_forward.1} parent=0 // pred_check_branch
    %29 = sbr.rel (0) target = $region25
  $region24: #{critic_forward.1} parent=0 // pred_region
    _
  $region25: #{critic_forward.1} parent=0 // pred_fallthru
    _
  // Predicated region
  $region26: #{critic_forward.1} parent=0 // pred_check
    _
  $region27: #{critic_forward.1} parent=0 // pred_check_branch
    %31 = sbr.rel (0) target = $region29
  $region28: #{critic_forward.1} parent=0 // pred_region
    _
  $region29: #{critic_forward.1} parent=0 // pred_fallthru
    _
  // Predicated region
  $region30: #{critic_forward.1} parent=0 // pred_check
    _
  $region31: #{critic_forward.1} parent=0 // pred_check_branch
    %33 = sbr.rel (0) target = $region33
  $region32: #{critic_forward.1} parent=0 // pred_region
    _
  $region33: #{critic_forward.1} parent=0 // pred_fallthru
    _
  // Predicated region
  $region34: #{critic_forward.1} parent=0 // pred_check
    _
  $region35: #{critic_forward.1} parent=0 // pred_check_branch
    %35 = sbr.rel (0) target = $region37
  $region36: #{critic_forward.1} parent=0 // pred_region
    _
  $region37: #{critic_forward.1} parent=0 // pred_fallthru
    _
  // Predicated region
  $region38: #{critic_forward.1} parent=0 // pred_check
    _
  $region39: #{critic_forward.1} parent=0 // pred_check_branch
    %37 = sbr.rel (0) target = $region41
  $region40: #{critic_forward.1} parent=0 // pred_region
    _
  $region41: #{critic_forward.1} parent=0 // pred_fallthru
    _
  // Predicated region
  $region42: #{critic_forward.1} parent=0 // pred_check
    _
  $region43: #{critic_forward.1} parent=0 // pred_check_branch
    %39 = sbr.rel (0) target = $region45
  $region44: #{critic_forward.1} parent=0 // pred_region
    _
  $region45: #{critic_forward.1} parent=0 // pred_fallthru
    _
  %v40 = vld [vmem:[%s0] sm:$0xf]
  %v41 = vld [vmem:[%s2] sm:$0xff]
  %v42 = vld [vmem:[%s2 + $0x8] sm:$0xff]
  %v43 = vld [vmem:[%s2 + $0x10] sm:$0xff]
  %v44 = vld [vmem:[%s2 + $0x18] sm:$0xff]
  %v45 = vld [vmem:[%s2 + $0x20] sm:$0xff]
  %v46 = vld [vmem:[%s2 + $0x28] sm:$0xff]
  %v47 = vld [vmem:[%s1] sm:$0xf]
  %v48 = vld [vmem:[%s3] sm:$0xff]
  %v49 = vld [vmem:[%s3 + $0x8] sm:$0xff]
  %vm50 = vcmask 130048
  %v52 = vsel %vm50, %v47, 0
  %54 = vmatprep.subr.mxu0 0.0
  %55 = vmatpush1.msra.mxu0 %v48
  %56 = vmatprep.subr.mxu0 0.0
  %57 = vmatpush1.msra.mxu0 %v49
  %58 = vmatprep.subr.mxu0 0.0
  %59 = vmatpush1.msra.mxu0 0.0
  %60 = vmatprep.subr.mxu0 0.0
  %61 = vmatpush1.msra.mxu0 0.0
  %62 = vmatprep.subr.mxu0 0.0
  %63 = vmatpush1.msra.mxu0 0.0
  %64 = vmatprep.subr.mxu0 0.0
  %65 = vmatpush1.msra.mxu0 0.0
  %66 = vmatprep.subr.mxu0 0.0
  %67 = vmatpush1.msra.mxu0 0.0
  %68 = vmatprep.subr.mxu0 0.0
  %69 = vmatpush1.msra.mxu0 0.0
  %70 = vmatprep.subr.mxu0 0.0
  %71 = vmatpush1.msra.mxu0 0.0
  %72 = vmatprep.subr.mxu0 0.0
  %73 = vmatpush1.msra.mxu0 0.0
  %74 = vmatprep.subr.mxu0 0.0
  %75 = vmatpush1.msra.mxu0 0.0
  %76 = vmatprep.subr.mxu0 0.0
  %77 = vmatpush1.msra.mxu0 0.0
  %78 = vmatprep.subr.mxu0 0.0
  %79 = vmatpush1.msra.mxu0 0.0
  %80 = vmatprep.subr.mxu0 0.0
  %81 = vmatpush1.msra.mxu0 0.0
  %82 = vmatprep.subr.mxu0 0.0
  %83 = vmatpush1.msra.mxu0 0.0
  %84 = vmatprep.subr.mxu0 0.0
  %85 = vmatpush1.msra.mxu0 0.0
  %86 = vmatprep.subr.mxu0 0.0
  %87 = vmatpush1.msra.mxu0 0.0
  %88 = vmatprep.subr.mxu0 0.0
  %89 = vmatpush1.msra.mxu0 0.0
  %90 = vmatprep.subr.mxu0 0.0
  %91 = vmatpush1.msra.mxu0 0.0
  %92 = vmatprep.subr.mxu0 0.0
  %93 = vmatpush1.msra.mxu0 0.0
  %94 = vmatprep.subr.mxu0 0.0
  %95 = vmatpush1.msra.mxu0 0.0
  %96 = vmatprep.subr.mxu0 0.0
  %97 = vmatpush1.msra.mxu0 0.0
  %98 = vmatprep.subr.mxu0 0.0
  %99 = vmatpush1.msra.mxu0 0.0
  %100 = vmatprep.subr.mxu0 0.0
  %101 = vmatpush1.msra.mxu0 0.0
  %102 = vmatprep.subr.mxu0 0.0
  %103 = vmatpush1.msra.mxu0 0.0
  %104 = vmatprep.subr.mxu0 0.0
  %105 = vmatpush1.msra.mxu0 0.0
  %106 = vmatprep.subr.mxu0 0.0
  %107 = vmatpush1.msra.mxu0 0.0
  %108 = vmatprep.subr.mxu0 0.0
  %109 = vmatpush1.msra.mxu0 0.0
  %110 = vmatprep.subr.mxu0 0.0
  %111 = vmatpush1.msra.mxu0 0.0
  %112 = vmatprep.subr.mxu0 0.0
  %113 = vmatpush1.msra.mxu0 0.0
  %114 = vmatprep.subr.mxu0 0.0
  %115 = vmatpush1.msra.mxu0 0.0
  %116 = vmatprep.subr.mxu0 0.0
  %117 = vmatpush1.msra.mxu0 0.0
  %118 = vmatprep.mubr.f32.mxu0 0.0
  %119 = vmatmul.mubr.f32.gmra.mrb[0].mxu0 %v52
  %v120 = vpop.f32.mrb[0].mxu0
  %v121 = vadd.f32 0.0, %v120
  %v122 = vpop.f32.mrb[0].mxu0
  %123 = vdwg.mxu0
  %vm124 = vcmask 392192
  %v126 = vsel %vm124, %v40, 0
  %128 = vmatprep.subr.mxu0 0.0
  %129 = vmatpush1.msra.mxu0 %v41
  %130 = vmatprep.subr.mxu0 0.0
  %131 = vmatpush1.msra.mxu0 %v42
  %132 = vmatprep.subr.mxu0 0.0
  %133 = vmatpush1.msra.mxu0 %v43
  %134 = vmatprep.subr.mxu0 0.0
  %135 = vmatpush1.msra.mxu0 %v44
  %136 = vmatprep.subr.mxu0 0.0
  %137 = vmatpush1.msra.mxu0 %v45
  %138 = vmatprep.subr.mxu0 0.0
  %139 = vmatpush1.msra.mxu0 %v46
  %140 = vmatprep.subr.mxu0 0.0
  %141 = vmatpush1.msra.mxu0 0.0
  %142 = vmatprep.subr.mxu0 0.0
  %143 = vmatpush1.msra.mxu0 0.0
  %144 = vmatprep.subr.mxu0 0.0
  %145 = vmatpush1.msra.mxu0 0.0
  %146 = vmatprep.subr.mxu0 0.0
  %147 = vmatpush1.msra.mxu0 0.0
  %148 = vmatprep.subr.mxu0 0.0
  %149 = vmatpush1.msra.mxu0 0.0
  %150 = vmatprep.subr.mxu0 0.0
  %151 = vmatpush1.msra.mxu0 0.0
  %152 = vmatprep.subr.mxu0 0.0
  %153 = vmatpush1.msra.mxu0 0.0
  %154 = vmatprep.subr.mxu0 0.0
  %155 = vmatpush1.msra.mxu0 0.0
  %156 = vmatprep.subr.mxu0 0.0
  %157 = vmatpush1.msra.mxu0 0.0
  %158 = vmatprep.subr.mxu0 0.0
  %159 = vmatpush1.msra.mxu0 0.0
  %160 = vmatprep.subr.mxu0 0.0
  %161 = vmatpush1.msra.mxu0 0.0
  %162 = vmatprep.subr.mxu0 0.0
  %163 = vmatpush1.msra.mxu0 0.0
  %164 = vmatprep.subr.mxu0 0.0
  %165 = vmatpush1.msra.mxu0 0.0
  %166 = vmatprep.subr.mxu0 0.0
  %167 = vmatpush1.msra.mxu0 0.0
  %168 = vmatprep.subr.mxu0 0.0
  %169 = vmatpush1.msra.mxu0 0.0
  %170 = vmatprep.subr.mxu0 0.0
  %171 = vmatpush1.msra.mxu0 0.0
  %172 = vmatprep.subr.mxu0 0.0
  %173 = vmatpush1.msra.mxu0 0.0
  %174 = vmatprep.subr.mxu0 0.0
  %175 = vmatpush1.msra.mxu0 0.0
  %176 = vmatprep.subr.mxu0 0.0
  %177 = vmatpush1.msra.mxu0 0.0
  %178 = vmatprep.subr.mxu0 0.0
  %179 = vmatpush1.msra.mxu0 0.0
  %180 = vmatprep.subr.mxu0 0.0
  %181 = vmatpush1.msra.mxu0 0.0
  %182 = vmatprep.subr.mxu0 0.0
  %183 = vmatpush1.msra.mxu0 0.0
  %184 = vmatprep.subr.mxu0 0.0
  %185 = vmatpush1.msra.mxu0 0.0
  %186 = vmatprep.subr.mxu0 0.0
  %187 = vmatpush1.msra.mxu0 0.0
  %188 = vmatprep.subr.mxu0 0.0
  %189 = vmatpush1.msra.mxu0 0.0
  %190 = vmatprep.subr.mxu0 0.0
  %191 = vmatpush1.msra.mxu0 0.0
  %192 = vmatprep.mubr.f32.mxu0 0.0
  %193 = vmatmul.mubr.f32.gmra.mrb[0].mxu0 %v126
  %v194 = vpop.f32.mrb[0].mxu0
  %v195 = vadd.f32 %v121, %v194
  %v196 = vpop.f32.mrb[0].mxu0
  %197 = vdwg.mxu0
  %v198 = vld [vmem:[%s4] sm:$0x1]
  %v200 = vlaneseq
  %v201 = vshrl.u32 %v200, 7
  %v202 = vsub.s32 0, %v201
  %v203 = vrot.slane %v198, %v202
  %v205 = vadd.f32 %v195, %v203
  %v206 = vtanh.pop %v205
  %v207 = vld [vmem:[%s5] sm:$0xff]
  %v208 = vld [vmem:[%s5 + $0x8] sm:$0xff]
  %v209 = vld [vmem:[%s5 + $0x10] sm:$0xff]
  %v210 = vld [vmem:[%s5 + $0x18] sm:$0xff]
  %v211 = vld [vmem:[%s5 + $0x20] sm:$0xff]
  %v212 = vld [vmem:[%s5 + $0x28] sm:$0xff]
  %v213 = vld [vmem:[%s5 + $0x30] sm:$0xff]
  %v214 = vld [vmem:[%s5 + $0x38] sm:$0xff]
  %v215 = vld [vmem:[%s5 + $0x40] sm:$0xff]
  %v216 = vld [vmem:[%s5 + $0x48] sm:$0xff]
  %v217 = vld [vmem:[%s5 + $0x50] sm:$0xff]
  %v218 = vld [vmem:[%s5 + $0x58] sm:$0xff]
  %v219 = vld [vmem:[%s5 + $0x60] sm:$0xff]
  %v220 = vld [vmem:[%s5 + $0x68] sm:$0xff]
  %v221 = vld [vmem:[%s5 + $0x70] sm:$0xff]
  %v222 = vld [vmem:[%s5 + $0x78] sm:$0xff]
  %v223 = vld [vmem:[%s6] sm:$0x1]
  %v225 = vlaneseq
  %v226 = vshrl.u32 %v225, 7
  %v227 = vsub.s32 0, %v226
  %v228 = vrot.slane %v223, %v227
  %230 = vmatprep.subr.mxu0 0.0
  %231 = vmatpush1.msra.mxu0 %v207
  %232 = vmatprep.subr.mxu0 0.0
  %233 = vmatpush1.msra.mxu0 %v208
  %234 = vmatprep.subr.mxu0 0.0
  %235 = vmatpush1.msra.mxu0 %v209
  %236 = vmatprep.subr.mxu0 0.0
  %237 = vmatpush1.msra.mxu0 %v210
  %238 = vmatprep.subr.mxu0 0.0
  %239 = vmatpush1.msra.mxu0 %v211
  %240 = vmatprep.subr.mxu0 0.0
  %241 = vmatpush1.msra.mxu0 %v212
  %242 = vmatprep.subr.mxu0 0.0
  %243 = vmatpush1.msra.mxu0 %v213
  %244 = vmatprep.subr.mxu0 0.0
  %245 = vmatpush1.msra.mxu0 %v214
  %246 = vmatprep.subr.mxu0 0.0
  %247 = vmatpush1.msra.mxu0 %v215
  %248 = vmatprep.subr.mxu0 0.0
  %249 = vmatpush1.msra.mxu0 %v216
  %250 = vmatprep.subr.mxu0 0.0
  %251 = vmatpush1.msra.mxu0 %v217
  %252 = vmatprep.subr.mxu0 0.0
  %253 = vmatpush1.msra.mxu0 %v218
  %254 = vmatprep.subr.mxu0 0.0
  %255 = vmatpush1.msra.mxu0 %v219
  %256 = vmatprep.subr.mxu0 0.0
  %257 = vmatpush1.msra.mxu0 %v220
  %258 = vmatprep.subr.mxu0 0.0
  %259 = vmatpush1.msra.mxu0 %v221
  %260 = vmatprep.subr.mxu0 0.0
  %261 = vmatpush1.msra.mxu0 %v222
  %262 = vmatprep.subr.mxu0 0.0
  %263 = vmatpush1.msra.mxu0 0.0
  %264 = vmatprep.subr.mxu0 0.0
  %265 = vmatpush1.msra.mxu0 0.0
  %266 = vmatprep.subr.mxu0 0.0
  %267 = vmatpush1.msra.mxu0 0.0
  %268 = vmatprep.subr.mxu0 0.0
  %269 = vmatpush1.msra.mxu0 0.0
  %270 = vmatprep.subr.mxu0 0.0
  %271 = vmatpush1.msra.mxu0 0.0
  %272 = vmatprep.subr.mxu0 0.0
  %273 = vmatpush1.msra.mxu0 0.0
  %274 = vmatprep.subr.mxu0 0.0
  %275 = vmatpush1.msra.mxu0 0.0
  %276 = vmatprep.subr.mxu0 0.0
  %277 = vmatpush1.msra.mxu0 0.0
  %278 = vmatprep.subr.mxu0 0.0
  %279 = vmatpush1.msra.mxu0 0.0
  %280 = vmatprep.subr.mxu0 0.0
  %281 = vmatpush1.msra.mxu0 0.0
  %282 = vmatprep.subr.mxu0 0.0
  %283 = vmatpush1.msra.mxu0 0.0
  %284 = vmatprep.subr.mxu0 0.0
  %285 = vmatpush1.msra.mxu0 0.0
  %286 = vmatprep.subr.mxu0 0.0
  %287 = vmatpush1.msra.mxu0 0.0
  %288 = vmatprep.subr.mxu0 0.0
  %289 = vmatpush1.msra.mxu0 0.0
  %290 = vmatprep.subr.mxu0 0.0
  %291 = vmatpush1.msra.mxu0 0.0
  %292 = vmatprep.subr.mxu0 0.0
  %293 = vmatpush1.msra.mxu0 0.0
  %294 = vmatprep.mubr.f32.mxu0 0.0
  %295 = vmatmul.mubr.f32.gmra.mrb[0].mxu0 %v206
  %v296 = vpop.f32.mrb[0].mxu0
  %v297 = vadd.f32 %v228, %v296
  %v298 = vpop.f32.mrb[0].mxu0
  %299 = vdwg.mxu0
  %v300 = vtanh.pop %v297
  %v301 = vld [vmem:[%s7] sm:$0xff]
  %v302 = vld [vmem:[%s7 + $0x8] sm:$0xff]
  %v303 = vld [vmem:[%s7 + $0x10] sm:$0xff]
  %v304 = vld [vmem:[%s7 + $0x18] sm:$0xff]
  %v305 = vld [vmem:[%s7 + $0x20] sm:$0xff]
  %v306 = vld [vmem:[%s7 + $0x28] sm:$0xff]
  %v307 = vld [vmem:[%s7 + $0x30] sm:$0xff]
  %v308 = vld [vmem:[%s7 + $0x38] sm:$0xff]
  %v309 = vld [vmem:[%s7 + $0x40] sm:$0xff]
  %v310 = vld [vmem:[%s7 + $0x48] sm:$0xff]
  %v311 = vld [vmem:[%s7 + $0x50] sm:$0xff]
  %v312 = vld [vmem:[%s7 + $0x58] sm:$0xff]
  %v313 = vld [vmem:[%s7 + $0x60] sm:$0xff]
  %v314 = vld [vmem:[%s7 + $0x68] sm:$0xff]
  %v315 = vld [vmem:[%s7 + $0x70] sm:$0xff]
  %v316 = vld [vmem:[%s7 + $0x78] sm:$0xff]
  %v317 = vld [vmem:[%s8] sm:$0x1]
  %v319 = vlaneseq
  %v320 = vshrl.u32 %v319, 7
  %v321 = vsub.s32 0, %v320
  %v322 = vrot.slane %v317, %v321
  %324 = vmatprep.subr.mxu0 0.0
  %325 = vmatpush1.msra.mxu0 %v301
  %326 = vmatprep.subr.mxu0 0.0
  %327 = vmatpush1.msra.mxu0 %v302
  %328 = vmatprep.subr.mxu0 0.0
  %329 = vmatpush1.msra.mxu0 %v303
  %330 = vmatprep.subr.mxu0 0.0
  %331 = vmatpush1.msra.mxu0 %v304
  %332 = vmatprep.subr.mxu0 0.0
  %333 = vmatpush1.msra.mxu0 %v305
  %334 = vmatprep.subr.mxu0 0.0
  %335 = vmatpush1.msra.mxu0 %v306
  %336 = vmatprep.subr.mxu0 0.0
  %337 = vmatpush1.msra.mxu0 %v307
  %338 = vmatprep.subr.mxu0 0.0
  %339 = vmatpush1.msra.mxu0 %v308
  %340 = vmatprep.subr.mxu0 0.0
  %341 = vmatpush1.msra.mxu0 %v309
  %342 = vmatprep.subr.mxu0 0.0
  %343 = vmatpush1.msra.mxu0 %v310
  %344 = vmatprep.subr.mxu0 0.0
  %345 = vmatpush1.msra.mxu0 %v311
  %346 = vmatprep.subr.mxu0 0.0
  %347 = vmatpush1.msra.mxu0 %v312
  %348 = vmatprep.subr.mxu0 0.0
  %349 = vmatpush1.msra.mxu0 %v313
  %350 = vmatprep.subr.mxu0 0.0
  %351 = vmatpush1.msra.mxu0 %v314
  %352 = vmatprep.subr.mxu0 0.0
  %353 = vmatpush1.msra.mxu0 %v315
  %354 = vmatprep.subr.mxu0 0.0
  %355 = vmatpush1.msra.mxu0 %v316
  %356 = vmatprep.subr.mxu0 0.0
  %357 = vmatpush1.msra.mxu0 0.0
  %358 = vmatprep.subr.mxu0 0.0
  %359 = vmatpush1.msra.mxu0 0.0
  %360 = vmatprep.subr.mxu0 0.0
  %361 = vmatpush1.msra.mxu0 0.0
  %362 = vmatprep.subr.mxu0 0.0
  %363 = vmatpush1.msra.mxu0 0.0
  %364 = vmatprep.subr.mxu0 0.0
  %365 = vmatpush1.msra.mxu0 0.0
  %366 = vmatprep.subr.mxu0 0.0
  %367 = vmatpush1.msra.mxu0 0.0
  %368 = vmatprep.subr.mxu0 0.0
  %369 = vmatpush1.msra.mxu0 0.0
  %370 = vmatprep.subr.mxu0 0.0
  %371 = vmatpush1.msra.mxu0 0.0
  %372 = vmatprep.subr.mxu0 0.0
  %373 = vmatpush1.msra.mxu0 0.0
  %374 = vmatprep.subr.mxu0 0.0
  %375 = vmatpush1.msra.mxu0 0.0
  %376 = vmatprep.subr.mxu0 0.0
  %377 = vmatpush1.msra.mxu0 0.0
  %378 = vmatprep.subr.mxu0 0.0
  %379 = vmatpush1.msra.mxu0 0.0
  %380 = vmatprep.subr.mxu0 0.0
  %381 = vmatpush1.msra.mxu0 0.0
  %382 = vmatprep.subr.mxu0 0.0
  %383 = vmatpush1.msra.mxu0 0.0
  %384 = vmatprep.subr.mxu0 0.0
  %385 = vmatpush1.msra.mxu0 0.0
  %386 = vmatprep.subr.mxu0 0.0
  %387 = vmatpush1.msra.mxu0 0.0
  %388 = vmatprep.mubr.f32.mxu0 0.0
  %389 = vmatmul.mubr.f32.gmra.mrb[0].mxu0 %v300
  %v390 = vpop.f32.mrb[0].mxu0
  %v391 = vadd.f32 %v322, %v390
  %v392 = vpop.f32.mrb[0].mxu0
  %393 = vdwg.mxu0
  %v394 = vtanh.pop %v391
  %v395 = vld [vmem:[%s9] sm:$0xf]
  %v396 = vld [vmem:[#allocation2] sm:$0x1]
  %v398 = vlaneseq
  %v399 = vshrl.u32 %v398, 7
  %v400 = vsub.s32 0, %v399
  %v401 = vrot.slane %v396, %v400
  %402 = vset.pattern.permute.xlu0 0
  %403 = vperm.xlu0 %402, %v401
  %v404 = vpop.permute.xlu0 %403
  %406 = vmatprep.subr.mxu0 0.0
  %407 = vmatpush1.xpose.msra.mxu0 %v394
  %408 = vmatprep.subr.mxu0 0.0
  %409 = vmatpush1.xpose.msra.mxu0 0.0
  %410 = vmatprep.subr.mxu0 0.0
  %411 = vmatpush1.xpose.msra.mxu0 0.0
  %412 = vmatprep.subr.mxu0 0.0
  %413 = vmatpush1.xpose.msra.mxu0 0.0
  %414 = vmatprep.subr.mxu0 0.0
  %415 = vmatpush1.xpose.msra.mxu0 0.0
  %416 = vmatprep.subr.mxu0 0.0
  %417 = vmatpush1.xpose.msra.mxu0 0.0
  %418 = vmatprep.subr.mxu0 0.0
  %419 = vmatpush1.xpose.msra.mxu0 0.0
  %420 = vmatprep.subr.mxu0 0.0
  %421 = vmatpush1.xpose.msra.mxu0 0.0
  %422 = vmatprep.subr.mxu0 0.0
  %423 = vmatpush1.xpose.msra.mxu0 0.0
  %424 = vmatprep.subr.mxu0 0.0
  %425 = vmatpush1.xpose.msra.mxu0 0.0
  %426 = vmatprep.subr.mxu0 0.0
  %427 = vmatpush1.xpose.msra.mxu0 0.0
  %428 = vmatprep.subr.mxu0 0.0
  %429 = vmatpush1.xpose.msra.mxu0 0.0
  %430 = vmatprep.subr.mxu0 0.0
  %431 = vmatpush1.xpose.msra.mxu0 0.0
  %432 = vmatprep.subr.mxu0 0.0
  %433 = vmatpush1.xpose.msra.mxu0 0.0
  %434 = vmatprep.subr.mxu0 0.0
  %435 = vmatpush1.xpose.msra.mxu0 0.0
  %436 = vmatprep.subr.mxu0 0.0
  %437 = vmatpush1.xpose.msra.mxu0 0.0
  %438 = vmatprep.subr.mxu0 0.0
  %439 = vmatpush1.xpose.msra.mxu0 0.0
  %440 = vmatprep.subr.mxu0 0.0
  %441 = vmatpush1.xpose.msra.mxu0 0.0
  %442 = vmatprep.subr.mxu0 0.0
  %443 = vmatpush1.xpose.msra.mxu0 0.0
  %444 = vmatprep.subr.mxu0 0.0
  %445 = vmatpush1.xpose.msra.mxu0 0.0
  %446 = vmatprep.subr.mxu0 0.0
  %447 = vmatpush1.xpose.msra.mxu0 0.0
  %448 = vmatprep.subr.mxu0 0.0
  %449 = vmatpush1.xpose.msra.mxu0 0.0
  %450 = vmatprep.subr.mxu0 0.0
  %451 = vmatpush1.xpose.msra.mxu0 0.0
  %452 = vmatprep.subr.mxu0 0.0
  %453 = vmatpush1.xpose.msra.mxu0 0.0
  %454 = vmatprep.subr.mxu0 0.0
  %455 = vmatpush1.xpose.msra.mxu0 0.0
  %456 = vmatprep.subr.mxu0 0.0
  %457 = vmatpush1.xpose.msra.mxu0 0.0
  %458 = vmatprep.subr.mxu0 0.0
  %459 = vmatpush1.xpose.msra.mxu0 0.0
  %460 = vmatprep.subr.mxu0 0.0
  %461 = vmatpush1.xpose.msra.mxu0 0.0
  %462 = vmatprep.subr.mxu0 0.0
  %463 = vmatpush1.xpose.msra.mxu0 0.0
  %464 = vmatprep.subr.mxu0 0.0
  %465 = vmatpush1.xpose.msra.mxu0 0.0
  %466 = vmatprep.subr.mxu0 0.0
  %467 = vmatpush1.xpose.msra.mxu0 0.0
  %468 = vmatprep.subr.mxu0 0.0
  %469 = vmatpush1.xpose.msra.mxu0 0.0
  %470 = vmatprep.mubr.f32.mxu0 0.0
  %471 = vmatmul.mubr.f32.gmra.mrb[0].mxu0 %v395
  %v472 = vpop.f32.mrb[0].mxu0
  %v473 = vadd.f32 %v404, %v472
  %v474 = vpop.f32.mrb[0].mxu0
  %475 = vdwg.mxu0
  %vm476 = vcmask 27648
  %477 = vst.msk [vmem:[%s11] sm:$0xf] %vm476, %v473
  // Predicated region
  $region46: #{critic_forward.1} parent=0 // pred_check
    _
  $region47: #{critic_forward.1} parent=0 // pred_check_branch
    %479 = sbr.rel (0) target = $region49
  $region48: #{critic_forward.1} parent=0 // pred_region
    _
  $region49: #{critic_forward.1} parent=0 // pred_fallthru
    _
  // Predicated region
  $region50: #{critic_forward.1} parent=0 // pred_check
    _
  $region51: #{critic_forward.1} parent=0 // pred_check_branch
    %481 = sbr.rel (0) target = $region53
  $region52: #{critic_forward.1} parent=0 // pred_region
    _
  $region53: #{critic_forward.1} parent=0 // pred_fallthru
    _

</llo_original>
